<compile_context>
chip_gen: v6e
topology: v6e:2x2x1
jax: 0.10.0
libtpu: 0.0.40
codegen_flags: <defaults>
</compile_context>

<pallas_src>
import jax
import jax.numpy as jnp
from jax.experimental import pallas as pl
from jax.experimental.pallas import tpu as pltpu


def make_rnn_kernel(num_layers):
    """L tanh-RNN cells (seq_len=1, h0=0 ⇒ W_hh term is exactly zero) + Linear.

    ref order: x, [W_l (in,H) bf16, b_l (1,H) f32] * L, W_fc (H,C) bf16,
               b_fc (1,C) f32, out (TILE_B, C) f32
    """
    # TODO(synk): only valid for seq_len == 1 / zero initial hidden state; the
    # W_hh recurrence must be restored if longer sequences are ever fed.
    def kernel(*refs):
        x_ref = refs[0]
        out_ref = refs[-1]
        w_refs = refs[1:-1]

        h = x_ref[...].astype(jnp.float32)               # (TILE_B, in)
        idx = 0
        for _ in range(num_layers):
            W = w_refs[idx][...]                         # (in, H) bf16, pre-transposed
            b = w_refs[idx + 1][...]                     # (1, H) f32 = b_ih + b_hh
            idx += 2
            pre = jnp.dot(h.astype(W.dtype), W,
                          preferred_element_type=jnp.float32) + b
            h = jnp.tanh(pre)                            # (TILE_B, H) f32

        W_fc = w_refs[idx][...]                          # (H, C) bf16, pre-transposed
        b_fc = w_refs[idx + 1][...]                      # (1, C) f32
        out = jnp.dot(h.astype(W_fc.dtype), W_fc,
                      preferred_element_type=jnp.float32) + b_fc
        out_ref[...] = out.astype(out_ref.dtype)

    return kernel


def rnn_forward(x, params, num_layers, num_classes, *, tile_b=256):
    """params: W_ih_l, W_hh_l, b_ih_l, b_hh_l (l = 0..L-1), W_fc, b_fc."""
    B, input_size = x.shape
    hidden_size = params["W_ih_0"].shape[0]

    # Batch tile: multiple of 8 (sublane), capped at tile_b; pad batch to fit.
    tile_b = min(tile_b, max(8, -(-B // 8) * 8))
    B_pad = -(-B // tile_b) * tile_b
    if B_pad != B:
        x = jnp.pad(x, ((0, B_pad - B), (0, 0)))
    grid = (B_pad // tile_b,)

    def resident(arr):
        shape = arr.shape
        return pl.BlockSpec(shape, lambda i, _s=shape: (0,) * len(_s))

    # Host-side weight prep: drop W_hh, fuse biases, pre-transpose, cast bf16.
    inputs = [x]
    in_specs = [pl.BlockSpec((tile_b, input_size), lambda i: (i, 0))]
    for l in range(num_layers):
        W = params[f"W_ih_{l}"].T.astype(jnp.bfloat16)            # (in, H)
        b = (params[f"b_ih_{l}"] + params[f"b_hh_{l}"]).reshape(1, -1)
        inputs += [W, b]
        in_specs += [resident(W), resident(b)]
    W_fc = params["W_fc"].T.astype(jnp.bfloat16)                  # (H, C)
    b_fc = params["b_fc"].reshape(1, -1)
    inputs += [W_fc, b_fc]
    in_specs += [resident(W_fc), resident(b_fc)]

    flops = 2 * B_pad * (input_size * hidden_size
                         + (num_layers - 1) * hidden_size * hidden_size
                         + hidden_size * num_classes)
    bytes_accessed = (sum(int(a.size) * a.dtype.itemsize for a in inputs)
                      + B_pad * num_classes * 4)
    cost = pl.CostEstimate(flops=flops,
                           transcendentals=B_pad * hidden_size * num_layers,
                           bytes_accessed=bytes_accessed)

    out = pl.pallas_call(
        make_rnn_kernel(num_layers),
        grid=grid,
        out_shape=jax.ShapeDtypeStruct((B_pad, num_classes), jnp.float32),
        in_specs=in_specs,
        out_specs=pl.BlockSpec((tile_b, num_classes), lambda i: (i, 0)),
        compiler_params=pltpu.CompilerParams(
            dimension_semantics=("parallel",),
            vmem_limit_bytes=32 << 20,
        ),
        cost_estimate=cost,
    )(*inputs)
    return out[:B]


def init_params(key, input_size, hidden_size, num_layers, num_classes):
    """Deterministic init mimicking PyTorch's U(-1/sqrt(H), 1/sqrt(H))."""
    params = {}
    k = 1.0 / jnp.sqrt(hidden_size)
    keys = jax.random.split(key, 4 * num_layers + 2)
    ki = 0
    for l in range(num_layers):
        in_feat = input_size if l == 0 else hidden_size
        params[f"W_ih_{l}"] = jax.random.uniform(
            keys[ki], (hidden_size, in_feat), jnp.float32, -k, k); ki += 1
        params[f"W_hh_{l}"] = jax.random.uniform(
            keys[ki], (hidden_size, hidden_size), jnp.float32, -k, k); ki += 1
        params[f"b_ih_{l}"] = jax.random.uniform(
            keys[ki], (hidden_size,), jnp.float32, -k, k); ki += 1
        params[f"b_hh_{l}"] = jax.random.uniform(
            keys[ki], (hidden_size,), jnp.float32, -k, k); ki += 1
    params["W_fc"] = jax.random.uniform(
        keys[ki], (num_classes, hidden_size), jnp.float32, -k, k); ki += 1
    params["b_fc"] = jax.random.uniform(
        keys[ki], (num_classes,), jnp.float32, -k, k)
    return params


def rnn_reference(x, params, num_layers):
    """Pure-JAX f32 reference of the PyTorch forward (seq_len=1, h0=0)."""
    h = x
    for l in range(num_layers):
        pre = (h @ params[f"W_ih_{l}"].T
               + params[f"b_ih_{l}"]
               + params[f"b_hh_{l}"])
        h = jnp.tanh(pre)
    return h @ params["W_fc"].T + params["b_fc"]


if __name__ == "__main__":
    input_size, hidden_size, num_layers, num_classes = 16, 32, 2, 10
    batch = 2

    key = jax.random.PRNGKey(0)
    kx, kp = jax.random.split(key)
    x = jax.random.normal(kx, (batch, input_size), jnp.float32)
    params = init_params(kp, input_size, hidden_size, num_layers, num_classes)

    out = rnn_forward(x, params, num_layers, num_classes)
    out = jax.block_until_ready(out)

    ref = rnn_reference(x, params, num_layers)
    assert out.shape == (batch, num_classes)
    # bf16 weights ⇒ allow a small quantization tolerance vs the f32 reference.
    assert jnp.allclose(out, ref, atol=2e-2, rtol=2e-2), "mismatch vs reference"
    print("KERNEL_OK")
</pallas_src>

<mosaic_0001>
module attributes {stable_mosaic.version = 11 : i64} {
  func.func @kernel(%arg0: i32, %arg1: memref<8x16xf32, #tpu.memory_space<vmem>>, %arg2: memref<16x32xbf16, #tpu.memory_space<vmem>>, %arg3: memref<1x32xf32, #tpu.memory_space<vmem>>, %arg4: memref<32x32xbf16, #tpu.memory_space<vmem>>, %arg5: memref<1x32xf32, #tpu.memory_space<vmem>>, %arg6: memref<32x10xbf16, #tpu.memory_space<vmem>>, %arg7: memref<1x10xf32, #tpu.memory_space<vmem>>, %arg8: memref<8x10xf32, #tpu.memory_space<vmem>>) attributes {dimension_semantics = [#tpu.dimension_semantics<parallel>], iteration_bounds = array<i64: 1>, scalar_prefetch = 0 : i64, scratch_operands = 0 : i64, tpu.core_type = #tpu.core_type<tc>, window_params = [{transform_indices = @transform_0, window_bounds = array<i64: 8, 16>}, {pipeline_mode = #tpu.pipeline_mode<synchronous>, transform_indices = @transform_1, window_bounds = array<i64: 16, 32>}, {pipeline_mode = #tpu.pipeline_mode<synchronous>, transform_indices = @transform_2, window_bounds = array<i64: 1, 32>}, {pipeline_mode = #tpu.pipeline_mode<synchronous>, transform_indices = @transform_3, window_bounds = array<i64: 32, 32>}, {pipeline_mode = #tpu.pipeline_mode<synchronous>, transform_indices = @transform_4, window_bounds = array<i64: 1, 32>}, {pipeline_mode = #tpu.pipeline_mode<synchronous>, transform_indices = @transform_5, window_bounds = array<i64: 32, 10>}, {pipeline_mode = #tpu.pipeline_mode<synchronous>, transform_indices = @transform_6, window_bounds = array<i64: 1, 10>}, {transform_indices = @transform_7, window_bounds = array<i64: 8, 10>}]} {
    %c0 = arith.constant 0 : index
    %c0_0 = arith.constant 0 : index
    %0 = vector.load %arg1[%c0, %c0_0] : memref<8x16xf32, #tpu.memory_space<vmem>>, vector<8x16xf32>
    %c0_1 = arith.constant 0 : index
    %c0_2 = arith.constant 0 : index
    %1 = vector.load %arg2[%c0_1, %c0_2] : memref<16x32xbf16, #tpu.memory_space<vmem>>, vector<16x32xbf16>
    %c0_3 = arith.constant 0 : index
    %c0_4 = arith.constant 0 : index
    %2 = vector.load %arg3[%c0_3, %c0_4] : memref<1x32xf32, #tpu.memory_space<vmem>>, vector<1x32xf32>
    %3 = arith.truncf %0 : vector<8x16xf32> to vector<8x16xbf16>
    %cst = arith.constant dense<0.000000e+00> : vector<8x32xf32>
    %4 = tpu.matmul %3, %1, %cst {dimension_numbers = #tpu.dot_dimension_numbers<[1], [0], [0], [1], [0, 0, 1, 1], [], []>} : vector<8x16xbf16>, vector<16x32xbf16>, vector<8x32xf32> -> vector<8x32xf32>
    %5 = vector.broadcast %2 : vector<1x32xf32> to vector<8x32xf32>
    %6 = arith.addf %4, %5 : vector<8x32xf32>
    %7 = math.tanh %6 : vector<8x32xf32>
    %c0_5 = arith.constant 0 : index
    %c0_6 = arith.constant 0 : index
    %8 = vector.load %arg4[%c0_5, %c0_6] : memref<32x32xbf16, #tpu.memory_space<vmem>>, vector<32x32xbf16>
    %c0_7 = arith.constant 0 : index
    %c0_8 = arith.constant 0 : index
    %9 = vector.load %arg5[%c0_7, %c0_8] : memref<1x32xf32, #tpu.memory_space<vmem>>, vector<1x32xf32>
    %10 = arith.truncf %7 : vector<8x32xf32> to vector<8x32xbf16>
    %cst_9 = arith.constant dense<0.000000e+00> : vector<8x32xf32>
    %11 = tpu.matmul %10, %8, %cst_9 {dimension_numbers = #tpu.dot_dimension_numbers<[1], [0], [0], [1], [0, 0, 1, 1], [], []>} : vector<8x32xbf16>, vector<32x32xbf16>, vector<8x32xf32> -> vector<8x32xf32>
    %12 = vector.broadcast %9 : vector<1x32xf32> to vector<8x32xf32>
    %13 = arith.addf %11, %12 : vector<8x32xf32>
    %14 = math.tanh %13 : vector<8x32xf32>
    %c0_10 = arith.constant 0 : index
    %c0_11 = arith.constant 0 : index
    %15 = vector.load %arg6[%c0_10, %c0_11] : memref<32x10xbf16, #tpu.memory_space<vmem>>, vector<32x10xbf16>
    %c0_12 = arith.constant 0 : index
    %c0_13 = arith.constant 0 : index
    %16 = vector.load %arg7[%c0_12, %c0_13] : memref<1x10xf32, #tpu.memory_space<vmem>>, vector<1x10xf32>
    %17 = arith.truncf %14 : vector<8x32xf32> to vector<8x32xbf16>
    %cst_14 = arith.constant dense<0.000000e+00> : vector<8x10xf32>
    %18 = tpu.matmul %17, %15, %cst_14 {dimension_numbers = #tpu.dot_dimension_numbers<[1], [0], [0], [1], [0, 0, 1, 1], [], []>} : vector<8x32xbf16>, vector<32x10xbf16>, vector<8x10xf32> -> vector<8x10xf32>
    %19 = vector.broadcast %16 : vector<1x10xf32> to vector<8x10xf32>
    %20 = arith.addf %18, %19 : vector<8x10xf32>
    %c0_15 = arith.constant 0 : index
    %c0_16 = arith.constant 0 : index
    %21 = vector.load %arg8[%c0_15, %c0_16] : memref<8x10xf32, #tpu.memory_space<vmem>>, vector<8x10xf32>
    tpu.vector_store %arg8[%c0_15, %c0_16], %20 {strides = array<i32>} : memref<8x10xf32, #tpu.memory_space<vmem>>, vector<8x10xf32>,
    return
  }
  func.func @transform_0(%arg0: i32) -> (i32, i32) {
    %c0_i32 = arith.constant 0 : i32
    %c0_i32_0 = arith.constant 0 : i32
    return %arg0, %c0_i32 : i32, i32
  }
  func.func @transform_1(%arg0: i32) -> (i32, i32) {
    %c0_i32 = arith.constant 0 : i32
    %c0_i32_0 = arith.constant 0 : i32
    %c0_i32_1 = arith.constant 0 : i32
    return %c0_i32, %c0_i32_0 : i32, i32
  }
  func.func @transform_2(%arg0: i32) -> (i32, i32) {
    %c0_i32 = arith.constant 0 : i32
    %c0_i32_0 = arith.constant 0 : i32
    %c0_i32_1 = arith.constant 0 : i32
    return %c0_i32, %c0_i32_0 : i32, i32
  }
  func.func @transform_3(%arg0: i32) -> (i32, i32) {
    %c0_i32 = arith.constant 0 : i32
    %c0_i32_0 = arith.constant 0 : i32
    %c0_i32_1 = arith.constant 0 : i32
    return %c0_i32, %c0_i32_0 : i32, i32
  }
  func.func @transform_4(%arg0: i32) -> (i32, i32) {
    %c0_i32 = arith.constant 0 : i32
    %c0_i32_0 = arith.constant 0 : i32
    %c0_i32_1 = arith.constant 0 : i32
    return %c0_i32, %c0_i32_0 : i32, i32
  }
  func.func @transform_5(%arg0: i32) -> (i32, i32) {
    %c0_i32 = arith.constant 0 : i32
    %c0_i32_0 = arith.constant 0 : i32
    %c0_i32_1 = arith.constant 0 : i32
    return %c0_i32, %c0_i32_0 : i32, i32
  }
  func.func @transform_6(%arg0: i32) -> (i32, i32) {
    %c0_i32 = arith.constant 0 : i32
    %c0_i32_0 = arith.constant 0 : i32
    %c0_i32_1 = arith.constant 0 : i32
    return %c0_i32, %c0_i32_0 : i32, i32
  }
  func.func @transform_7(%arg0: i32) -> (i32, i32) {
    %c0_i32 = arith.constant 0 : i32
    %c0_i32_0 = arith.constant 0 : i32
    return %arg0, %c0_i32 : i32, i32
  }
}

</mosaic_0001>

<llo_original>
// kernel: tpu_custom_call.1
$region0: #{tpu_custom_call.1}
  #allocation0 [shape = 'u32[]', space=smem, size = 0x4, offset = 0x4, fixed_abs, tag = 'smem constant byte address 0x4 - core index']
  #allocation1 [shape = 'u32[144,128]{1,0:T(1,128)}', space=vmem, size = 0x12000, scoped, tag = 'internal scratch']
  %s0 = inlined_call_operand.vmem [shape: f32[8,16], index: 0, kind: input, shape index: {}]
  %s1 = inlined_call_operand.hbm [shape: bf16[16,32], index: 1, kind: input, shape index: {}]
  %s2 = inlined_call_operand.vmem [shape: f32[1,32], index: 2, kind: input, shape index: {}]
  %s3 = inlined_call_operand.vmem [shape: bf16[32,32], index: 3, kind: input, shape index: {}]
  %s4 = inlined_call_operand.hbm [shape: f32[1,32], index: 4, kind: input, shape index: {}]
  %s5 = inlined_call_operand.vmem [shape: bf16[32,10], index: 5, kind: input, shape index: {}]
  %s6 = inlined_call_operand.vmem [shape: f32[1,10], index: 6, kind: input, shape index: {}]
  %s7 = inlined_call_operand.hbm [shape: f32[8,10], index: 7, kind: output, shape index: {}]
  %s8 = sld [smem:[#allocation0]]
  $region46: #{tpu_custom_call.1} parent=0
    _
  %s10 = ssub.s32 1, %s8
  %s11 = scalar_select 0, %s10, %s8
  $region1: #{tpu_custom_call.1} parent=0
    #allocation2 [shape = 'u8[4096]{0}', space=vmem, size = 0x1000, scoped, tag = 'input window, operand 1, single buffered']
    #allocation3 [shape = 's32[1]{0}', space=sflag, size = 0x4, scoped, tag = 'scoped memory for tpu_custom_call.1']
    #allocation4 [shape = 's32[1]{0}', space=sflag, size = 0x4, scoped, tag = 'scoped memory for tpu_custom_call.1']
    #allocation5 [shape = 'u8[512]{0}', space=vmem, size = 0x400, scoped, tag = 'input window, operand 4, single buffered']
    #allocation6 [shape = 's32[1]{0}', space=sflag, size = 0x4, scoped, tag = 'scoped memory for tpu_custom_call.1']
    #allocation7 [shape = 'u8[4096]{0}', space=vmem, size = 0x1000, scoped, tag = 'output window, operand 0, single buffered']
    %12 = vsyncpa [#allocation3], 0
    %13 = vsyncpa [#allocation6], 0
    %14 = vsyncpa [#allocation4], 0
    // Predicated region
    $region2: #{tpu_custom_call.1} parent=1 // pred_check
      _
    $region3: #{tpu_custom_call.1} parent=1 // pred_check_branch
      %16 = sbr.rel (0) target = $region5
    $region4: #{tpu_custom_call.1} parent=1 // pred_region
      _
    $region5: #{tpu_custom_call.1} parent=1 // pred_fallthru
      _
    // Predicated region
    $region6: #{tpu_custom_call.1} parent=1 // pred_check
      _
    $region7: #{tpu_custom_call.1} parent=1 // pred_check_branch
      %18 = sbr.rel (0) target = $region9
    $region8: #{tpu_custom_call.1} parent=1 // pred_region
      %s20 = ssub.s32 128, 128
      %21 = vsyncadd [#allocation3], %s20
      %s22 = sshll.u32 [#allocation2], 4
      %s23 = int_to_ptr.vmem [resolvable:$true] %s22
      %28 = dma.hbm_to_vmem [thread:$0]  %s1, 128, %s23, [#allocation3], 64, 64, 4
    $region9: #{tpu_custom_call.1} parent=1 // pred_fallthru
      _
    // Predicated region
    $region10: #{tpu_custom_call.1} parent=1 // pred_check
      _
    $region11: #{tpu_custom_call.1} parent=1 // pred_check_branch
      %30 = sbr.rel (0) target = $region13
    $region12: #{tpu_custom_call.1} parent=1 // pred_region
      _
    $region13: #{tpu_custom_call.1} parent=1 // pred_fallthru
      _
    // Predicated region
    $region14: #{tpu_custom_call.1} parent=1 // pred_check
      _
    $region15: #{tpu_custom_call.1} parent=1 // pred_check_branch
      %32 = sbr.rel (0) target = $region17
    $region16: #{tpu_custom_call.1} parent=1 // pred_region
      _
    $region17: #{tpu_custom_call.1} parent=1 // pred_fallthru
      _
    // Predicated region
    $region18: #{tpu_custom_call.1} parent=1 // pred_check
      _
    $region19: #{tpu_custom_call.1} parent=1 // pred_check_branch
      %34 = sbr.rel (0) target = $region21
    $region20: #{tpu_custom_call.1} parent=1 // pred_region
      %s36 = ssub.s32 16, 16
      %37 = vsyncadd [#allocation6], %s36
      %s39 = sshll.u32 [#allocation5], 4
      %s40 = int_to_ptr.vmem [resolvable:$true] %s39
      %42 = dma.hbm_to_vmem [thread:$0]  %s4, 16, %s40, [#allocation6]
    $region21: #{tpu_custom_call.1} parent=1 // pred_fallthru
      _
    // Predicated region
    $region22: #{tpu_custom_call.1} parent=1 // pred_check
      _
    $region23: #{tpu_custom_call.1} parent=1 // pred_check_branch
      %44 = sbr.rel (0) target = $region25
    $region24: #{tpu_custom_call.1} parent=1 // pred_region
      _
    $region25: #{tpu_custom_call.1} parent=1 // pred_fallthru
      _
    // Predicated region
    $region26: #{tpu_custom_call.1} parent=1 // pred_check
      _
    $region27: #{tpu_custom_call.1} parent=1 // pred_check_branch
      %46 = sbr.rel (0) target = $region29
    $region28: #{tpu_custom_call.1} parent=1 // pred_region
      _
    $region29: #{tpu_custom_call.1} parent=1 // pred_fallthru
      _
    // Predicated region
    $region30: #{tpu_custom_call.1} parent=1 // pred_check
      _
    $region31: #{tpu_custom_call.1} parent=1 // pred_check_branch
      %48 = sbr.rel (0) target = $region33
    $region32: #{tpu_custom_call.1} parent=1 // pred_region
      %49 = dma.done [#allocation3], 128
    $region33: #{tpu_custom_call.1} parent=1 // pred_fallthru
      _
    // Predicated region
    $region34: #{tpu_custom_call.1} parent=1 // pred_check
      _
    $region35: #{tpu_custom_call.1} parent=1 // pred_check_branch
      %51 = sbr.rel (0) target = $region37
    $region36: #{tpu_custom_call.1} parent=1 // pred_region
      %52 = dma.done [#allocation6], 16
    $region37: #{tpu_custom_call.1} parent=1 // pred_fallthru
      _
    %v54 = vld [vmem:[%s0] sm:$0xff]
    %v55 = vld [vmem:[#allocation2] sm:$0xf]
    %v56 = vld [vmem:[#allocation2 + $0x4] sm:$0xf]
    %v57 = vld [vmem:[%s2] sm:$0x1]
    %v58 = vpack.c.bf16 %v54, %v54
    %v60 = vlaneseq
    %v61 = vshrl.u32 %v60, 7
    %v62 = vsub.s32 0, %v61
    %v63 = vrot.slane %v57, %v62
    %v67 = vunpack.c.l.b16 %v55
    %v68 = vunpack.c.l.b16 %v56
    %v69 = vpack.c.b16 %v68, %v67
    %vm71 = vcmask 130048
    %v73 = vsel %vm71, %v58, 0
    %75 = vmatprep.subr.bf16.mxu0 0
    %76 = vmatpush1.bf16.msra.mxu0 0
    %77 = vmatprep.subr.bf16.mxu0 0
    %78 = vmatpush1.bf16.msra.mxu0 0
    %79 = vmatprep.subr.bf16.mxu0 0
    %80 = vmatpush1.bf16.msra.mxu0 0
    %81 = vmatprep.subr.bf16.mxu0 0
    %82 = vmatpush1.bf16.msra.mxu0 0
    %83 = vmatprep.subr.bf16.mxu0 0
    %84 = vmatpush1.bf16.msra.mxu0 0
    %85 = vmatprep.subr.bf16.mxu0 0
    %86 = vmatpush1.bf16.msra.mxu0 0
    %87 = vmatprep.subr.bf16.mxu0 0
    %88 = vmatpush1.bf16.msra.mxu0 0
    %89 = vmatprep.subr.bf16.mxu0 0
    %90 = vmatpush1.bf16.msra.mxu0 %v69
    %91 = vmatprep.subr.bf16.mxu0 0
    %92 = vmatpush2.bf16.msra.mxu0 0
    %93 = vmatprep.subr.bf16.mxu0 0
    %94 = vmatpush2.bf16.msra.mxu0 0
    %95 = vmatprep.subr.bf16.mxu0 0
    %96 = vmatpush2.bf16.msra.mxu0 0
    %97 = vmatprep.subr.bf16.mxu0 0
    %98 = vmatpush2.bf16.msra.mxu0 0
    %99 = vmatprep.subr.bf16.mxu0 0
    %100 = vmatpush2.bf16.msra.mxu0 0
    %101 = vmatprep.subr.bf16.mxu0 0
    %102 = vmatpush2.bf16.msra.mxu0 0
    %103 = vmatprep.subr.bf16.mxu0 0
    %104 = vmatpush2.bf16.msra.mxu0 0
    %105 = vmatprep.subr.bf16.mxu0 0
    %106 = vmatpush2.bf16.msra.mxu0 0
    %107 = vmatprep.mubr.bf16.mxu0 0
    %108 = vmatmul.mubr.bf16.gmra.mxu0 %v73
    %v109 = vpop.f32.mrf.mxu0
    %v110 = vadd.f32 %v63, %v109
    %v111 = vpop.f32.mrf.mxu0
    %v112 = vpop.f32.mrf.mxu0
    %v113 = vpop.f32.mrf.mxu0
    %114 = vdwg.mxu0
    %v115 = vtanh.pop %v110
    %v116 = vld [vmem:[%s3] sm:$0xf]
    %v117 = vld [vmem:[%s3 + $0x4] sm:$0xf]
    %v118 = vld [vmem:[%s3 + $0x8] sm:$0xf]
    %v119 = vld [vmem:[%s3 + $0xc] sm:$0xf]
    %v120 = vld [vmem:[#allocation5] sm:$0x1]
    %v121 = vpack.c.bf16 %v115, %v115
    %v123 = vlaneseq
    %v124 = vshrl.u32 %v123, 7
    %v125 = vsub.s32 0, %v124
    %v126 = vrot.slane %v120, %v125
    %v132 = vunpack.c.l.b16 %v116
    %v133 = vunpack.c.l.b16 %v117
    %v134 = vunpack.c.l.b16 %v118
    %v135 = vunpack.c.l.b16 %v119
    %v136 = vpack.c.b16 %v133, %v132
    %v137 = vpack.c.b16 %v135, %v134
    %vm140 = vcmask 261120
    %v142 = vsel %vm140, %v121, 0
    %144 = vmatprep.subr.bf16.mxu0 0
    %145 = vmatpush1.bf16.msra.mxu0 0
    %146 = vmatprep.subr.bf16.mxu0 0
    %147 = vmatpush1.bf16.msra.mxu0 0
    %148 = vmatprep.subr.bf16.mxu0 0
    %149 = vmatpush1.bf16.msra.mxu0 0
    %150 = vmatprep.subr.bf16.mxu0 0
    %151 = vmatpush1.bf16.msra.mxu0 0
    %152 = vmatprep.subr.bf16.mxu0 0
    %153 = vmatpush1.bf16.msra.mxu0 0
    %154 = vmatprep.subr.bf16.mxu0 0
    %155 = vmatpush1.bf16.msra.mxu0 0
    %156 = vmatprep.subr.bf16.mxu0 0
    %157 = vmatpush1.bf16.msra.mxu0 %v137
    %158 = vmatprep.subr.bf16.mxu0 0
    %159 = vmatpush1.bf16.msra.mxu0 %v136
    %160 = vmatprep.subr.bf16.mxu0 0
    %161 = vmatpush2.bf16.msra.mxu0 0
    %162 = vmatprep.subr.bf16.mxu0 0
    %163 = vmatpush2.bf16.msra.mxu0 0
    %164 = vmatprep.subr.bf16.mxu0 0
    %165 = vmatpush2.bf16.msra.mxu0 0
    %166 = vmatprep.subr.bf16.mxu0 0
    %167 = vmatpush2.bf16.msra.mxu0 0
    %168 = vmatprep.subr.bf16.mxu0 0
    %169 = vmatpush2.bf16.msra.mxu0 0
    %170 = vmatprep.subr.bf16.mxu0 0
    %171 = vmatpush2.bf16.msra.mxu0 0
    %172 = vmatprep.subr.bf16.mxu0 0
    %173 = vmatpush2.bf16.msra.mxu0 0
    %174 = vmatprep.subr.bf16.mxu0 0
    %175 = vmatpush2.bf16.msra.mxu0 0
    %176 = vmatprep.mubr.bf16.mxu0 0
    %177 = vmatmul.mubr.bf16.gmra.mxu0 %v142
    %v178 = vpop.f32.mrf.mxu0
    %v179 = vadd.f32 %v126, %v178
    %v180 = vpop.f32.mrf.mxu0
    %v181 = vpop.f32.mrf.mxu0
    %v182 = vpop.f32.mrf.mxu0
    %183 = vdwg.mxu0
    %v184 = vtanh.pop %v179
    %v185 = vld [vmem:[%s5] sm:$0xf]
    %v186 = vld [vmem:[%s5 + $0x4] sm:$0xf]
    %v187 = vld [vmem:[%s5 + $0x8] sm:$0xf]
    %v188 = vld [vmem:[%s5 + $0xc] sm:$0xf]
    %v189 = vld [vmem:[%s6] sm:$0x1]
    %v190 = vpack.c.bf16 %v184, %v184
    %v192 = vlaneseq
    %v193 = vshrl.u32 %v192, 7
    %v194 = vsub.s32 0, %v193
    %v195 = vrot.slane %v189, %v194
    %v201 = vunpack.c.l.b16 %v185
    %v202 = vunpack.c.l.b16 %v186
    %v203 = vunpack.c.l.b16 %v187
    %v204 = vunpack.c.l.b16 %v188
    %v205 = vpack.c.b16 %v202, %v201
    %v206 = vpack.c.b16 %v204, %v203
    %v210 = vsel %vm140, %v190, 0
    %212 = vmatprep.subr.bf16.mxu0 0
    %213 = vmatpush1.bf16.msra.mxu0 0
    %214 = vmatprep.subr.bf16.mxu0 0
    %215 = vmatpush1.bf16.msra.mxu0 0
    %216 = vmatprep.subr.bf16.mxu0 0
    %217 = vmatpush1.bf16.msra.mxu0 0
    %218 = vmatprep.subr.bf16.mxu0 0
    %219 = vmatpush1.bf16.msra.mxu0 0
    %220 = vmatprep.subr.bf16.mxu0 0
    %221 = vmatpush1.bf16.msra.mxu0 0
    %222 = vmatprep.subr.bf16.mxu0 0
    %223 = vmatpush1.bf16.msra.mxu0 0
    %224 = vmatprep.subr.bf16.mxu0 0
    %225 = vmatpush1.bf16.msra.mxu0 %v206
    %226 = vmatprep.subr.bf16.mxu0 0
    %227 = vmatpush1.bf16.msra.mxu0 %v205
    %228 = vmatprep.subr.bf16.mxu0 0
    %229 = vmatpush2.bf16.msra.mxu0 0
    %230 = vmatprep.subr.bf16.mxu0 0
    %231 = vmatpush2.bf16.msra.mxu0 0
    %232 = vmatprep.subr.bf16.mxu0 0
    %233 = vmatpush2.bf16.msra.mxu0 0
    %234 = vmatprep.subr.bf16.mxu0 0
    %235 = vmatpush2.bf16.msra.mxu0 0
    %236 = vmatprep.subr.bf16.mxu0 0
    %237 = vmatpush2.bf16.msra.mxu0 0
    %238 = vmatprep.subr.bf16.mxu0 0
    %239 = vmatpush2.bf16.msra.mxu0 0
    %240 = vmatprep.subr.bf16.mxu0 0
    %241 = vmatpush2.bf16.msra.mxu0 0
    %242 = vmatprep.subr.bf16.mxu0 0
    %243 = vmatpush2.bf16.msra.mxu0 0
    %244 = vmatprep.mubr.bf16.mxu0 0
    %245 = vmatmul.mubr.bf16.gmra.mxu0 %v210
    %v246 = vpop.f32.mrf.mxu0
    %v247 = vadd.f32 %v195, %v246
    %v248 = vpop.f32.mrf.mxu0
    %v249 = vpop.f32.mrf.mxu0
    %v250 = vpop.f32.mrf.mxu0
    %251 = vdwg.mxu0
    %vm252 = vcmask 80896
    %253 = vst.msk [vmem:[#allocation7] sm:$0xff] %vm252, %v247
    // Predicated region
    $region38: #{tpu_custom_call.1} parent=1 // pred_check
      _
    $region39: #{tpu_custom_call.1} parent=1 // pred_check_branch
      %255 = sbr.rel (0) target = $region41
    $region40: #{tpu_custom_call.1} parent=1 // pred_region
      %s257 = ssub.s32 128, 128
      %258 = vsyncadd [#allocation4], %s257
      %s260 = sshll.u32 [#allocation7], 4
      %s261 = int_to_ptr.vmem [resolvable:$true] %s260
      %263 = dma.vmem_to_hbm [thread:$0]  %s261, 128, %s7, [#allocation4]
    $region41: #{tpu_custom_call.1} parent=1 // pred_fallthru
      _
    // Predicated region
    $region42: #{tpu_custom_call.1} parent=1 // pred_check
      _
    $region43: #{tpu_custom_call.1} parent=1 // pred_check_branch
      %265 = sbr.rel (0) target = $region45
    $region44: #{tpu_custom_call.1} parent=1 // pred_region
      %266 = dma.done [#allocation4], 128
    $region45: #{tpu_custom_call.1} parent=1 // pred_fallthru
      _
    %267 = vsyncpa [#allocation3], 1
    %268 = vsyncpa [#allocation6], 1
    %269 = vsyncpa [#allocation4], 1

</llo_original>
